<compile_context>
chip_gen: v7x
topology: tpu7x:2x2x1
jax: 0.10.0
libtpu: 0.0.40
codegen_flags: <defaults>
</compile_context>

<pallas_src>
import jax
import jax.numpy as jnp
from jax.experimental import pallas as pl
from jax.experimental.pallas import tpu as pltpu


def _round_up(x: int, m: int) -> int:
    return (x + m - 1) // m * m


def _cdiv(a: int, b: int) -> int:
    return (a + b - 1) // b


def _vmem_capacity_bytes() -> int:
    """Best-effort physical-VMEM query; falls back to the smallest current
    generation (v7x: 64 MiB/TC) so oversized requests never break compile."""
    try:
        return int(pltpu.get_tpu_info().vmem_capacity_bytes)
    except Exception:
        return 64 << 20


def _default_tiles(vmem_cap: int):
    """Per-generation roofline-motivated defaults (callers may override)."""
    if vmem_cap >= (96 << 20):     # v5e / v6e: 128 MiB VMEM
        return 1024, 1024          # tile_m, block_h
    return 768, 512                # v7x (64 MiB) or unknown


# --------------------------------------------------------------------------- #
# Kernel
# --------------------------------------------------------------------------- #
def _ffn_kernel(x_ref, w1_ref, b1_ref, w2_ref, b2_ref, o_ref, acc_ref):
    # x_ref:  (tm, Dp)  bf16 input-row tile (constant across the hidden axis)
    # w1_ref: (Dp, th)  bf16 first-layer weight slab (hidden slice)
    # b1_ref: (1, th)   f32 first-layer bias slice
    # w2_ref: (th, Dp)  bf16 second-layer weight slab (hidden slice)
    # b2_ref: (1, Dp)   f32 second-layer bias
    # o_ref:  (tm, Dp)  output tile, written exactly once (lane-dense)
    # acc_ref:(tm, Dp)  f32 accumulator scratch
    hj = pl.program_id(1)
    last = pl.num_programs(1) - 1

    # First layer for this hidden slice: (tm, Dp) @ (Dp, th) -> f32, bias+ReLU in f32.
    h = jnp.dot(x_ref[...], w1_ref[...], preferred_element_type=jnp.float32)
    h = jnp.maximum(h + b1_ref[...], 0.0)

    # Partial second layer: (tm, th) @ (th, Dp), accumulated in f32.
    part = jnp.dot(h.astype(w2_ref.dtype), w2_ref[...],
                   preferred_element_type=jnp.float32)

    @pl.when(hj == 0)
    def _init():
        acc_ref[...] = part                      # plain store: no step-0 RMW / b2 broadcast

    @pl.when(hj != 0)
    def _accumulate():
        acc_ref[...] += part

    @pl.when(hj == last)
    def _finalize():
        # b2 folded into the single output store. Eval-mode dropout == identity.
        o_ref[...] = (acc_ref[...] + b2_ref[...]).astype(o_ref.dtype)


# --------------------------------------------------------------------------- #
# Wrappers
# --------------------------------------------------------------------------- #
def prepare_params(w1, b1, w2, b2, *, block_h=None, compute_dtype=jnp.bfloat16):
    """Pad + cast the weights ONCE (hoisted out of the per-call path).

    w1: (D, H), b1: (H,), w2: (H, D), b2: (D,)  (stored as in_features x out_features).
    """
    D, H = w1.shape
    vmem_cap = _vmem_capacity_bytes()
    if block_h is None:
        _, block_h = _default_tiles(vmem_cap)
    block_h = max(128, _round_up(min(block_h, _round_up(H, 128)), 128))

    Dp = _round_up(D, 128)                      # lane-dense contraction / output width
    Hp = _round_up(H, block_h)                  # hidden padded to a whole number of slabs

    w1p = jnp.zeros((Dp, Hp), compute_dtype).at[:D, :H].set(w1.astype(compute_dtype))
    w2p = jnp.zeros((Hp, Dp), compute_dtype).at[:H, :D].set(w2.astype(compute_dtype))
    b1p = jnp.zeros((1, Hp), jnp.float32).at[:, :H].set(b1.astype(jnp.float32))
    b2p = jnp.zeros((1, Dp), jnp.float32).at[:, :D].set(b2.astype(jnp.float32))

    return dict(w1=w1p, b1=b1p, w2=w2p, b2=b2p, D=D, H=H, Dp=Dp, Hp=Hp,
                block_h=block_h, compute_dtype=compute_dtype, vmem_cap=vmem_cap)


def feed_forward(x, params, *, tile_m=None, out_dtype=None):
    """x: (..., D). `params` from prepare_params(). Returns x-shaped output."""
    orig_shape = x.shape
    D, Dp, Hp = params["D"], params["Dp"], params["Hp"]
    block_h = params["block_h"]
    cdt = params["compute_dtype"]
    vmem_cap = params["vmem_cap"]
    assert orig_shape[-1] == D, "last dim of x must equal in_dim"
    out_dtype = out_dtype or x.dtype

    x2 = x.reshape(-1, D)
    M = x2.shape[0]

    # ---- row-tile sizing (MXU-friendly, generation-aware, VMEM-clamped) ----
    if tile_m is None:
        tile_m, _ = _default_tiles(vmem_cap)
    tile_m = min(tile_m, _round_up(M, 128))
    tile_m = _round_up(tile_m, 256) if tile_m >= 256 else _round_up(tile_m, 128)

    cb = jnp.dtype(cdt).itemsize
    ob = jnp.dtype(out_dtype).itemsize

    def _budget(tm):
        return (2 * tm * Dp * cb               # x tile (double-buffered)
                + 2 * Dp * block_h * cb        # W1 slab (double-buffered)
                + 2 * block_h * Dp * cb        # W2 slab (double-buffered)
                + 2 * (block_h + Dp) * 4       # biases
                + 2 * tm * Dp * ob             # output tile
                + tm * Dp * 4                  # f32 accumulator scratch
                + tm * block_h * (4 + cb)      # h intermediate (f32) + bf16 copy
                + (2 << 20))                   # headroom

    cap = int(0.85 * vmem_cap)                 # per-chip clamp (v7x: ~54 MiB, v5e/v6e: ~108 MiB)
    while _budget(tile_m) > cap and tile_m > 256:
        tile_m -= 256
    tile_m = max(tile_m, 128)

    Mp = _round_up(M, tile_m)
    n_m = Mp // tile_m

    # Megacore (v7x, 2 TCs): keep >=2 blocks on the "parallel" axis for large M.
    if n_m == 1 and tile_m > 256 and M > 256:
        tile_m = max(256, _round_up(_cdiv(M, 2), 256))
        Mp = _round_up(M, tile_m)
        n_m = Mp // tile_m

    n_h = Hp // block_h
    vmem_limit = int(min(max(_budget(tile_m), 32 << 20), cap))

    # ---- pad/cast x only when actually needed (skip slice/copy on aligned shapes) ----
    if M == Mp and D == Dp:
        xp = x2.astype(cdt)
    else:
        xp = jnp.zeros((Mp, Dp), cdt).at[:M, :D].set(x2.astype(cdt))

    out = pl.pallas_call(
        _ffn_kernel,
        out_shape=jax.ShapeDtypeStruct((Mp, Dp), out_dtype),
        grid_spec=pltpu.PrefetchScalarGridSpec(
            num_scalar_prefetch=0,
            grid=(n_m, n_h),
            in_specs=[
                pl.BlockSpec((tile_m, Dp), lambda i, j: (i, 0)),    # x rows
                pl.BlockSpec((Dp, block_h), lambda i, j: (0, j)),   # W1 hidden slab
                pl.BlockSpec((1, block_h), lambda i, j: (0, j)),    # b1 slice
                pl.BlockSpec((block_h, Dp), lambda i, j: (j, 0)),   # W2 hidden slab
                pl.BlockSpec((1, Dp), lambda i, j: (0, 0)),         # b2
            ],
            out_specs=pl.BlockSpec((tile_m, Dp), lambda i, j: (i, 0)),
            scratch_shapes=[pltpu.VMEM((tile_m, Dp), jnp.float32)],
        ),
        compiler_params=pltpu.CompilerParams(
            dimension_semantics=("parallel", "arbitrary"),
            vmem_limit_bytes=vmem_limit,
        ),
    )(xp, params["w1"], params["b1"], params["w2"], params["b2"])

    if M != Mp or D != Dp:
        out = out[:M, :D]
    return out.reshape(orig_shape)


def init_params(key, in_dim):
    """Deterministic init mimicking nn.Linear's U(-1/sqrt(fan_in), 1/sqrt(fan_in))."""
    hidden = 4 * in_dim
    k1, k2, k3, k4 = jax.random.split(key, 4)
    lim1 = 1.0 / jnp.sqrt(in_dim)
    lim2 = 1.0 / jnp.sqrt(hidden)
    # Stored as (in_features, out_features) so the kernel does x @ W directly.
    w1 = jax.random.uniform(k1, (in_dim, hidden), jnp.float32, -lim1, lim1)
    b1 = jax.random.uniform(k2, (hidden,), jnp.float32, -lim1, lim1)
    w2 = jax.random.uniform(k3, (hidden, in_dim), jnp.float32, -lim2, lim2)
    b2 = jax.random.uniform(k4, (in_dim,), jnp.float32, -lim2, lim2)
    return w1, b1, w2, b2


if __name__ == "__main__":
    key = jax.random.PRNGKey(0)
    kx, kp = jax.random.split(key)

    # Small demo consistent with the module: D=128 (lane-dense), H=4*D=512, M=16 rows.
    batch, seq, in_dim = 2, 8, 128
    x = jax.random.normal(kx, (batch, seq, in_dim), jnp.float32)
    w1, b1, w2, b2 = init_params(kp, in_dim)

    # Weights padded + cast to bf16 ONCE (not per call). block_h=256 exercises
    # the multi-step hidden-dim accumulation path at these small shapes.
    params = prepare_params(w1, b1, w2, b2, block_h=256)

    y = feed_forward(x, params)
    y = jax.block_until_ready(y)
    assert y.shape == x.shape and y.dtype == x.dtype

    # Reference with the same bf16 operand quantization / f32 accumulation as the
    # kernel (eval-mode dropout == identity).
    xb = x.astype(jnp.bfloat16)
    w1b = w1.astype(jnp.bfloat16)
    w2b = w2.astype(jnp.bfloat16)
    h_ref = jnp.maximum(
        jnp.dot(xb, w1b, preferred_element_type=jnp.float32) + b1, 0.0)
    ref = jnp.dot(h_ref.astype(jnp.bfloat16), w2b,
                  preferred_element_type=jnp.float32) + b2
    assert jnp.allclose(y, ref, atol=5e-3, rtol=5e-3), "mismatch vs bf16/f32 reference"

    # Looser sanity check against pure-f32 math as well.
    ref_f32 = jnp.maximum(x @ w1 + b1, 0.0) @ w2 + b2
    assert jnp.allclose(y, ref_f32, atol=3e-2, rtol=3e-2), "mismatch vs f32 reference"

    print("KERNEL_OK")
</pallas_src>

<mosaic_0001>
module attributes {stable_mosaic.version = 11 : i64} {
  func.func @_ffn_kernel(%arg0: i32, %arg1: i32, %arg2: memref<128x128xbf16, #tpu.memory_space<vmem>>, %arg3: memref<128x256xbf16, #tpu.memory_space<vmem>>, %arg4: memref<1x256xf32, #tpu.memory_space<vmem>>, %arg5: memref<256x128xbf16, #tpu.memory_space<vmem>>, %arg6: memref<1x128xf32, #tpu.memory_space<vmem>>, %arg7: memref<128x128xf32, #tpu.memory_space<vmem>>, %arg8: memref<128x128xf32, #tpu.memory_space<vmem>>) attributes {dimension_semantics = [#tpu.dimension_semantics<parallel>, #tpu.dimension_semantics<arbitrary>], iteration_bounds = array<i64: 1, 2>, scalar_prefetch = 0 : i64, scratch_operands = 1 : i64, tpu.core_type = #tpu.core_type<tc>, window_params = [{transform_indices = @transform_0, window_bounds = array<i64: 128, 128>}, {transform_indices = @transform_1, window_bounds = array<i64: 128, 256>}, {transform_indices = @transform_2, window_bounds = array<i64: 1, 256>}, {transform_indices = @transform_3, window_bounds = array<i64: 256, 128>}, {pipeline_mode = #tpu.pipeline_mode<synchronous>, transform_indices = @transform_4, window_bounds = array<i64: 1, 128>}, {transform_indices = @transform_5, window_bounds = array<i64: 128, 128>}]} {
    %c0 = arith.constant 0 : index
    %c0_0 = arith.constant 0 : index
    %0 = vector.load %arg2[%c0, %c0_0] : memref<128x128xbf16, #tpu.memory_space<vmem>>, vector<128x128xbf16>
    %c0_1 = arith.constant 0 : index
    %c0_2 = arith.constant 0 : index
    %1 = vector.load %arg3[%c0_1, %c0_2] : memref<128x256xbf16, #tpu.memory_space<vmem>>, vector<128x256xbf16>
    %cst = arith.constant dense<0.000000e+00> : vector<128x256xf32>
    %2 = tpu.matmul %0, %1, %cst {dimension_numbers = #tpu.dot_dimension_numbers<[1], [0], [0], [1], [0, 0, 1, 1], [], []>} : vector<128x128xbf16>, vector<128x256xbf16>, vector<128x256xf32> -> vector<128x256xf32>
    %c0_3 = arith.constant 0 : index
    %c0_4 = arith.constant 0 : index
    %3 = vector.load %arg4[%c0_3, %c0_4] : memref<1x256xf32, #tpu.memory_space<vmem>>, vector<1x256xf32>
    %4 = vector.broadcast %3 : vector<1x256xf32> to vector<128x256xf32>
    %5 = arith.addf %2, %4 : vector<128x256xf32>
    %cst_5 = arith.constant 0.000000e+00 : f32
    %6 = vector.broadcast %cst_5 : f32 to vector<128x256xf32>
    %7 = arith.maximumf %5, %6 : vector<128x256xf32>
    %8 = arith.truncf %7 : vector<128x256xf32> to vector<128x256xbf16>
    %c0_6 = arith.constant 0 : index
    %c0_7 = arith.constant 0 : index
    %9 = vector.load %arg5[%c0_6, %c0_7] : memref<256x128xbf16, #tpu.memory_space<vmem>>, vector<256x128xbf16>
    %cst_8 = arith.constant dense<0.000000e+00> : vector<128x128xf32>
    %10 = tpu.matmul %8, %9, %cst_8 {dimension_numbers = #tpu.dot_dimension_numbers<[1], [0], [0], [1], [0, 0, 1, 1], [], []>} : vector<128x256xbf16>, vector<256x128xbf16>, vector<128x128xf32> -> vector<128x128xf32>
    %c0_i32 = arith.constant 0 : i32
    %11 = arith.cmpi eq, %arg1, %c0_i32 : i32
    %12 = arith.extui %11 : i1 to i32
    %c0_i32_9 = arith.constant 0 : i32
    %13 = arith.cmpi ne, %12, %c0_i32_9 : i32
    scf.if %13 {
      %c0_13 = arith.constant 0 : index
      %c0_14 = arith.constant 0 : index
      %20 = vector.load %arg8[%c0_13, %c0_14] : memref<128x128xf32, #tpu.memory_space<vmem>>, vector<128x128xf32>
      tpu.vector_store %arg8[%c0_13, %c0_14], %10 {strides = array<i32>} : memref<128x128xf32, #tpu.memory_space<vmem>>, vector<128x128xf32>,
    } else {
    }
    %c0_i32_10 = arith.constant 0 : i32
    %14 = arith.cmpi ne, %arg1, %c0_i32_10 : i32
    %15 = arith.extui %14 : i1 to i32
    %c0_i32_11 = arith.constant 0 : i32
    %16 = arith.cmpi ne, %15, %c0_i32_11 : i32
    scf.if %16 {
      %c0_13 = arith.constant 0 : index
      %c0_14 = arith.constant 0 : index
      %20 = vector.load %arg8[%c0_13, %c0_14] : memref<128x128xf32, #tpu.memory_space<vmem>>, vector<128x128xf32>
      %21 = arith.addf %20, %10 : vector<128x128xf32>
      %c0_15 = arith.constant 0 : index
      %c0_16 = arith.constant 0 : index
      %22 = vector.load %arg8[%c0_15, %c0_16] : memref<128x128xf32, #tpu.memory_space<vmem>>, vector<128x128xf32>
      tpu.vector_store %arg8[%c0_15, %c0_16], %21 {strides = array<i32>} : memref<128x128xf32, #tpu.memory_space<vmem>>, vector<128x128xf32>,
    } else {
    }
    %c1_i32 = arith.constant 1 : i32
    %17 = arith.cmpi eq, %arg1, %c1_i32 : i32
    %18 = arith.extui %17 : i1 to i32
    %c0_i32_12 = arith.constant 0 : i32
    %19 = arith.cmpi ne, %18, %c0_i32_12 : i32
    scf.if %19 {
      %c0_13 = arith.constant 0 : index
      %c0_14 = arith.constant 0 : index
      %20 = vector.load %arg8[%c0_13, %c0_14] : memref<128x128xf32, #tpu.memory_space<vmem>>, vector<128x128xf32>
      %c0_15 = arith.constant 0 : index
      %c0_16 = arith.constant 0 : index
      %21 = vector.load %arg6[%c0_15, %c0_16] : memref<1x128xf32, #tpu.memory_space<vmem>>, vector<1x128xf32>
      %22 = vector.broadcast %21 : vector<1x128xf32> to vector<128x128xf32>
      %23 = arith.addf %20, %22 : vector<128x128xf32>
      %c0_17 = arith.constant 0 : index
      %c0_18 = arith.constant 0 : index
      %24 = vector.load %arg7[%c0_17, %c0_18] : memref<128x128xf32, #tpu.memory_space<vmem>>, vector<128x128xf32>
      tpu.vector_store %arg7[%c0_17, %c0_18], %23 {strides = array<i32>} : memref<128x128xf32, #tpu.memory_space<vmem>>, vector<128x128xf32>,
    } else {
    }
    return
  }
  func.func @transform_0(%arg0: i32, %arg1: i32) -> (i32, i32) {
    %c0_i32 = arith.constant 0 : i32
    %c0_i32_0 = arith.constant 0 : i32
    return %arg0, %c0_i32 : i32, i32
  }
  func.func @transform_1(%arg0: i32, %arg1: i32) -> (i32, i32) {
    %c0_i32 = arith.constant 0 : i32
    %c0_i32_0 = arith.constant 0 : i32
    return %c0_i32, %arg1 : i32, i32
  }
  func.func @transform_2(%arg0: i32, %arg1: i32) -> (i32, i32) {
    %c0_i32 = arith.constant 0 : i32
    %c0_i32_0 = arith.constant 0 : i32
    return %c0_i32, %arg1 : i32, i32
  }
  func.func @transform_3(%arg0: i32, %arg1: i32) -> (i32, i32) {
    %c0_i32 = arith.constant 0 : i32
    %c0_i32_0 = arith.constant 0 : i32
    return %arg1, %c0_i32 : i32, i32
  }
  func.func @transform_4(%arg0: i32, %arg1: i32) -> (i32, i32) {
    %c0_i32 = arith.constant 0 : i32
    %c0_i32_0 = arith.constant 0 : i32
    %c0_i32_1 = arith.constant 0 : i32
    return %c0_i32, %c0_i32_0 : i32, i32
  }
  func.func @transform_5(%arg0: i32, %arg1: i32) -> (i32, i32) {
    %c0_i32 = arith.constant 0 : i32
    %c0_i32_0 = arith.constant 0 : i32
    return %arg0, %c0_i32 : i32, i32
  }
}

</mosaic_0001>

<llo_original>
// kernel: tpu_custom_call.1
$region0: #{tpu_custom_call.1}
  #allocation0 [shape = 'u32[]', space=smem, size = 0x4, offset = 0x4, fixed_abs, tag = 'smem constant byte address 0x4 - core index']
  #allocation1 [shape = 'u32[144,128]{1,0:T(1,128)}', space=vmem, size = 0x12000, scoped, tag = 'internal scratch']
  #allocation2 [shape = 'f32[128,128]{1,0:T(8,128)}', space=vmem, size = 0x10000, scoped, tag = 'scratch operand']
  %s0 = inlined_call_operand.hbm [shape: bf16[128,128], index: 0, kind: input, shape index: {}]
  %s1 = inlined_call_operand.hbm [shape: bf16[128,512], index: 1, kind: input, shape index: {}]
  %s2 = inlined_call_operand.vmem [shape: f32[1,512], index: 2, kind: input, shape index: {}]
  %s3 = inlined_call_operand.hbm [shape: bf16[512,128], index: 3, kind: input, shape index: {}]
  %s4 = inlined_call_operand.vmem [shape: f32[1,128], index: 4, kind: input, shape index: {}]
  %s5 = inlined_call_operand.hbm [shape: f32[128,128], index: 5, kind: output, shape index: {}]
  %s6 = sld [smem:[#allocation0]]
  $region77: #{tpu_custom_call.1} parent=0
    _
  %s8 = ssub.s32 1, %s6
  %s9 = scalar_select 0, %s8, %s6
  $region1: #{tpu_custom_call.1} parent=0
    #allocation3 [shape = 'u8[32768]{0}', space=vmem, size = 0x8000, scoped, tag = 'input window, operand 0, single buffered']
    #allocation4 [shape = 's32[2]{0}', space=sflag, size = 0x8, scoped, tag = 'scoped memory for tpu_custom_call.1']
    #allocation5 [shape = 's32[2]{0}', space=sflag, size = 0x8, scoped, tag = 'scoped memory for tpu_custom_call.1']
    #allocation6 [shape = 'u8[131072]{0}', space=vmem, size = 0x20000, scoped, tag = 'input window, operand 1']
    #allocation7 [shape = 's32[2]{0}', space=sflag, size = 0x8, scoped, tag = 'scoped memory for tpu_custom_call.1']
    #allocation8 [shape = 'u8[131072]{0}', space=vmem, size = 0x20000, scoped, tag = 'input window, operand 3']
    #allocation9 [shape = 'u8[65536]{0}', space=vmem, size = 0x10000, scoped, tag = 'output window, operand 0, single buffered']
    %10 = vsyncpa [#allocation4], 0
    %11 = vsyncpa [#allocation7], 0
    %s12 = scalar_lea.sflag [#allocation7], 1
    %13 = vsyncpa %s12, 0
    %14 = vsyncpa [#allocation5], 0
    loop: start=0, step=1, limit=4
    $region2: #{tpu_custom_call.1} parent=1 // loop_pre_header
      _
    $region3: #{tpu_custom_call.1} parent=1 // loop_header
      %s16 = sphi 0, %s20
      %p17 = scmp.ge.s32.totalorder %s16, 4
      %s23 = sphi 0, %s35
      %s24 = sphi 0, %s31
      %s25 = sphi 0, %s23
      %s26 = sphi 0, %s24
      %s27 = sphi 0, %s25
      %s28 = sphi 0, %s26
      %s38 = sphi 0, %s40
      %s41 = sphi 0, %s38
      %s42 = sphi 0, %s41
      %s58 = sphi 0, %s42
      %s64 = sphi 0, %s66
      %s67 = sphi 0, %s64
      %s68 = sphi 0, %s67
      %s84 = sphi 0, %s68
      %s90 = sphi 0, %s92
      %s93 = sphi 0, %s90
      %s94 = sphi 0, %s93
      %s110 = sphi 0, %s94
      %s116 = sphi 0, %s118
      %s119 = sphi 0, %s116
      %s120 = sphi 0, %s119
      %s136 = sphi 0, %s120
      %s140 = sphi 0, %s140
      %s142 = sphi 0, %s140
      %s143 = sphi 0, %s142
      %s157 = sphi 0, %s143
      %s163 = sphi 0, %s165
      %s166 = sphi 0, %s163
      %s167 = sphi 0, %s166
      %s183 = sphi 0, %s167
    $region4: #{tpu_custom_call.1} parent=1 // loop_header_branch
      %19 = sbr.rel (%p17) target = $region8
    $region5: #{tpu_custom_call.1} parent=1 // loop_body
      %s21 = ssub.s32 %s16, 1
      %s22 = ssub.s32 %s16, 2
      %s29 = sadd.s32 1, %s24
      %p30 = scmp.ge.s32.totalorder %s29, 2
      %s31 = scalar_select %p30, 0, %s29
      %s32 = sadd.s32 1, %s23
      %s33 = scalar_select %p30, %s32, %s23
      %p34 = scmp.ge.s32.totalorder %s33, 1
      %s35 = scalar_select %p34, 0, %s33
      %s36 = ssub.s32 %s23, %s35
      %p37 = scmp.eq.s32.totalorder %s36, 0
      %s39 = sadd.s32 %s38, 1
      %s40 = scalar_select %p37, %s38, %s39
      %p43 = pneg %p37
      %p44 = scmp.eq.s32.totalorder %s16, 1
      %p45 = por %p43, %p44
      %p46 = scmp.ne.s32.totalorder %s38, %s41
      %p47 = scmp.eq.s32.totalorder %s16, 0
      %p48 = por %p46, %p47
      %p49 = scmp.ne.s32.totalorder %s38, %s41
      %p50 = scmp.eq.s32.totalorder %s21, 1
      %p51 = por %p49, %p50
      %p52 = scmp.ne.s32.totalorder %s41, %s42
      %p53 = scmp.eq.s32.totalorder %s21, 0
      %p54 = por %p52, %p53
      %p55 = scmp.ne.s32.totalorder %s41, %s42
      %p56 = scmp.eq.s32.totalorder %s22, 1
      %p57 = por %p55, %p56
      %p59 = scmp.ne.s32.totalorder %s42, %s58
      %p60 = scmp.eq.s32.totalorder %s22, 0
      %p61 = por %p59, %p60
      %s62 = ssub.s32 %s24, %s31
      %p63 = scmp.eq.s32.totalorder %s62, 0
      %s65 = sadd.s32 %s64, 1
      %s66 = scalar_select %p63, %s64, %s65
      %p69 = pneg %p63
      %p70 = scmp.eq.s32.totalorder %s16, 1
      %p71 = por %p69, %p70
      %p72 = scmp.ne.s32.totalorder %s64, %s67
      %p73 = scmp.eq.s32.totalorder %s16, 0
      %p74 = por %p72, %p73
      %p75 = scmp.ne.s32.totalorder %s64, %s67
      %p76 = scmp.eq.s32.totalorder %s21, 1
      %p77 = por %p75, %p76
      %p78 = scmp.ne.s32.totalorder %s67, %s68
      %p79 = scmp.eq.s32.totalorder %s21, 0
      %p80 = por %p78, %p79
      %p81 = scmp.ne.s32.totalorder %s67, %s68
      %p82 = scmp.eq.s32.totalorder %s22, 1
      %p83 = por %p81, %p82
      %p85 = scmp.ne.s32.totalorder %s68, %s84
      %p86 = scmp.eq.s32.totalorder %s22, 0
      %p87 = por %p85, %p86
      %s88 = ssub.s32 %s24, %s31
      %p89 = scmp.eq.s32.totalorder %s88, 0
      %s91 = sadd.s32 %s90, 1
      %s92 = scalar_select %p89, %s90, %s91
      %p95 = pneg %p89
      %p96 = scmp.eq.s32.totalorder %s16, 1
      %p97 = por %p95, %p96
      %p98 = scmp.ne.s32.totalorder %s90, %s93
      %p99 = scmp.eq.s32.totalorder %s16, 0
      %p100 = por %p98, %p99
      %p101 = scmp.ne.s32.totalorder %s90, %s93
      %p102 = scmp.eq.s32.totalorder %s21, 1
      %p103 = por %p101, %p102
      %p104 = scmp.ne.s32.totalorder %s93, %s94
      %p105 = scmp.eq.s32.totalorder %s21, 0
      %p106 = por %p104, %p105
      %p107 = scmp.ne.s32.totalorder %s93, %s94
      %p108 = scmp.eq.s32.totalorder %s22, 1
      %p109 = por %p107, %p108
      %p111 = scmp.ne.s32.totalorder %s94, %s110
      %p112 = scmp.eq.s32.totalorder %s22, 0
      %p113 = por %p111, %p112
      %s114 = ssub.s32 %s24, %s31
      %p115 = scmp.eq.s32.totalorder %s114, 0
      %s117 = sadd.s32 %s116, 1
      %s118 = scalar_select %p115, %s116, %s117
      %p121 = pneg %p115
      %p122 = scmp.eq.s32.totalorder %s16, 1
      %p123 = por %p121, %p122
      %p124 = scmp.ne.s32.totalorder %s116, %s119
      %p125 = scmp.eq.s32.totalorder %s16, 0
      %p126 = por %p124, %p125
      %p127 = scmp.ne.s32.totalorder %s116, %s119
      %p128 = scmp.eq.s32.totalorder %s21, 1
      %p129 = por %p127, %p128
      %p130 = scmp.ne.s32.totalorder %s119, %s120
      %p131 = scmp.eq.s32.totalorder %s21, 0
      %p132 = por %p130, %p131
      %p133 = scmp.ne.s32.totalorder %s119, %s120
      %p134 = scmp.eq.s32.totalorder %s22, 1
      %p135 = por %p133, %p134
      %p137 = scmp.ne.s32.totalorder %s120, %s136
      %p138 = scmp.eq.s32.totalorder %s22, 0
      %p139 = por %p137, %p138
      %s141 = sadd.s32 %s140, 1
      %p144 = scmp.eq.s32.totalorder %s16, 1
      %p145 = scmp.ne.s32.totalorder %s140, %s142
      %p146 = scmp.eq.s32.totalorder %s16, 0
      %p147 = por %p145, %p146
      %p148 = scmp.ne.s32.totalorder %s140, %s142
      %p149 = scmp.eq.s32.totalorder %s21, 1
      %p150 = por %p148, %p149
      %p151 = scmp.ne.s32.totalorder %s142, %s143
      %p152 = scmp.eq.s32.totalorder %s21, 0
      %p153 = por %p151, %p152
      %p154 = scmp.ne.s32.totalorder %s142, %s143
      %p155 = scmp.eq.s32.totalorder %s22, 1
      %p156 = por %p154, %p155
      %p158 = scmp.ne.s32.totalorder %s143, %s157
      %p159 = scmp.eq.s32.totalorder %s22, 0
      %p160 = por %p158, %p159
      %s161 = ssub.s32 %s23, %s35
      %p162 = scmp.eq.s32.totalorder %s161, 0
      %s164 = sadd.s32 %s163, 1
      %s165 = scalar_select %p162, %s163, %s164
      %p168 = pneg %p162
      %p169 = scmp.eq.s32.totalorder %s16, 1
      %p170 = por %p168, %p169
      %p171 = scmp.ne.s32.totalorder %s163, %s166
      %p172 = scmp.eq.s32.totalorder %s16, 0
      %p173 = por %p171, %p172
      %p174 = scmp.ne.s32.totalorder %s163, %s166
      %p175 = scmp.eq.s32.totalorder %s21, 1
      %p176 = por %p174, %p175
      %p177 = scmp.ne.s32.totalorder %s166, %s167
      %p178 = scmp.eq.s32.totalorder %s21, 0
      %p179 = por %p177, %p178
      %p180 = scmp.ne.s32.totalorder %s166, %s167
      %p181 = scmp.eq.s32.totalorder %s22, 1
      %p182 = por %p180, %p181
      %p184 = scmp.ne.s32.totalorder %s167, %s183
      %p185 = scmp.eq.s32.totalorder %s22, 0
      %p186 = por %p184, %p185
      %p187 = scmp.le.s32.totalorder 1, %s16
      %p188 = scmp.lt.s32.totalorder %s16, 3
      %p189 = pnand %p187, %p188
      %p190 = pneg %p189
      // Predicated region
      $region9: #{tpu_custom_call.1} parent=5 // pred_check
        _
      $region10: #{tpu_custom_call.1} parent=5 // pred_check_branch
        %192 = sbr.rel (%p189) target = $region12
      $region11: #{tpu_custom_call.1} parent=5 // pred_region
        %s193 = ssub.s32 %s16, 1
        // Predicated region
        $region13: #{tpu_custom_call.1} parent=11 // pred_check
          %p194 = pneg %p54
        $region14: #{tpu_custom_call.1} parent=11 // pred_check_branch
          %196 = sbr.rel (%p194) target = $region16
        $region15: #{tpu_custom_call.1} parent=11 // pred_region
          %s197 = smul.u32 16, %s25
          %s199 = ssub.s32 1024, 1024
          %200 = vsyncadd [#allocation4], %s199
          %s201 = smul.addr %s197, 64
          %s202 = scalar_lea.hbm %s0, %s201
          %s203 = sshll.u32 [#allocation3], 4
          %s204 = int_to_ptr.vmem [resolvable:$true] %s203
          %209 = dma.hbm_to_vmem [thread:$0]  %s202, 1024, %s204, [#allocation4], 64, 64, 4
        $region16: #{tpu_custom_call.1} parent=11 // pred_fallthru
          _
        // Predicated region
        $region17: #{tpu_custom_call.1} parent=11 // pred_check
          %p210 = pneg %p153
        $region18: #{tpu_custom_call.1} parent=11 // pred_check_branch
          %212 = sbr.rel (%p210) target = $region20
        $region19: #{tpu_custom_call.1} parent=11 // pred_region
          _
        $region20: #{tpu_custom_call.1} parent=11 // pred_fallthru
          _
      $region12: #{tpu_custom_call.1} parent=5 // pred_fallthru
        _
      %p213 = scmp.lt.s32.totalorder %s16, 2
      // Predicated region
      $region21: #{tpu_custom_call.1} parent=5 // pred_check
        %p214 = pneg %p213
      $region22: #{tpu_custom_call.1} parent=5 // pred_check_branch
        %216 = sbr.rel (%p214) target = $region24
      $region23: #{tpu_custom_call.1} parent=5 // pred_region
        // Predicated region
        $region25: #{tpu_custom_call.1} parent=23 // pred_check
          %p217 = pneg %p74
        $region26: #{tpu_custom_call.1} parent=23 // pred_check_branch
          %219 = sbr.rel (%p217) target = $region28
        $region27: #{tpu_custom_call.1} parent=23 // pred_region
          %s220 = sand.u32 %s16, 1
          %s221 = scalar_lea.sflag [#allocation7], %s220
          %s222 = sand.u32 %s64, 1
          %s223 = smul.addr %s222, 128
          %s224 = scalar_lea.vmem [#allocation6], %s223
          %s225 = smul.u32 2, %s24
          %s227 = ssub.s32 2048, 2048
          %228 = vsyncadd %s221, %s227
          %s229 = smul.addr %s225, 64
          %s230 = scalar_lea.hbm %s1, %s229
          %s231 = sshll.u32 %s224, 4
          %s232 = int_to_ptr.vmem [resolvable:$true] %s231
          %237 = dma.hbm_to_vmem [thread:$0]  %s230, 2048, %s232, %s221, 256, 128, 8
        $region28: #{tpu_custom_call.1} parent=23 // pred_fallthru
          _
        // Predicated region
        $region29: #{tpu_custom_call.1} parent=23 // pred_check
          %p238 = pneg %p100
        $region30: #{tpu_custom_call.1} parent=23 // pred_check_branch
          %240 = sbr.rel (%p238) target = $region32
        $region31: #{tpu_custom_call.1} parent=23 // pred_region
          %s241 = smul.u32 2, %s24
          %p242 = scmp.lt.s32.totalorder %s241, 3
          %s243 = scalar_select %p242, %s241, 3
          %s244 = scalar_lea.vmem %s2, %s243
          %s245 = smul.u32 2, %s24
        $region32: #{tpu_custom_call.1} parent=23 // pred_fallthru
          _
        // Predicated region
        $region33: #{tpu_custom_call.1} parent=23 // pred_check
          %p246 = pneg %p126
        $region34: #{tpu_custom_call.1} parent=23 // pred_check_branch
          %248 = sbr.rel (%p246) target = $region36
        $region35: #{tpu_custom_call.1} parent=23 // pred_region
          %s249 = sand.u32 %s16, 1
          %s250 = scalar_lea.sflag [#allocation7], %s249
          %s251 = sand.u32 %s116, 1
          %s252 = smul.addr %s251, 128
          %s253 = scalar_lea.vmem [#allocation8], %s252
          %s254 = smul.u32 32, %s24
          %s256 = ssub.s32 2048, 2048
          %257 = vsyncadd %s250, %s256
          %s258 = smul.addr %s254, 64
          %s259 = scalar_lea.hbm %s3, %s258
          %s260 = sshll.u32 %s253, 4
          %s261 = int_to_ptr.vmem [resolvable:$true] %s260
          %266 = dma.hbm_to_vmem [thread:$0]  %s259, 2048, %s261, %s250, 64, 64, 4
        $region36: #{tpu_custom_call.1} parent=23 // pred_fallthru
          _
      $region24: #{tpu_custom_call.1} parent=5 // pred_fallthru
        _
      %p267 = scmp.le.s32.totalorder 1, %s16
      %p268 = scmp.lt.s32.totalorder %s16, 3
      %p269 = pnand %p267, %p268
      %p270 = pneg %p269
      // Predicated region
      $region37: #{tpu_custom_call.1} parent=5 // pred_check
        _
      $region38: #{tpu_custom_call.1} parent=5 // pred_check_branch
        %272 = sbr.rel (%p269) target = $region40
      $region39: #{tpu_custom_call.1} parent=5 // pred_region
        %s273 = ssub.s32 %s16, 1
        // Predicated region
        $region41: #{tpu_custom_call.1} parent=39 // pred_check
          %p274 = pneg %p54
        $region42: #{tpu_custom_call.1} parent=39 // pred_check_branch
          %276 = sbr.rel (%p274) target = $region44
        $region43: #{tpu_custom_call.1} parent=39 // pred_region
          %277 = dma.done [#allocation4], 1024
        $region44: #{tpu_custom_call.1} parent=39 // pred_fallthru
          _
        %s278 = sand.u32 %s21, 1
        %s279 = scalar_lea.sflag [#allocation7], %s278
        %s280 = sand.u32 %s67, 1
        %s281 = smul.addr %s280, 128
        %s282 = scalar_lea.vmem [#allocation6], %s281
        // Predicated region
        $region45: #{tpu_custom_call.1} parent=39 // pred_check
          %p283 = pneg %p80
        $region46: #{tpu_custom_call.1} parent=39 // pred_check_branch
          %285 = sbr.rel (%p283) target = $region48
        $region47: #{tpu_custom_call.1} parent=39 // pred_region
          %286 = dma.done %s279, 2048
        $region48: #{tpu_custom_call.1} parent=39 // pred_fallthru
          _
        %s287 = sand.u32 %s21, 1
        %s288 = scalar_lea.sflag [#allocation7], %s287
        %s289 = sand.u32 %s119, 1
        %s290 = smul.addr %s289, 128
        %s291 = scalar_lea.vmem [#allocation8], %s290
        // Predicated region
        $region49: #{tpu_custom_call.1} parent=39 // pred_check
          %p292 = pneg %p132
        $region50: #{tpu_custom_call.1} parent=39 // pred_check_branch
          %294 = sbr.rel (%p292) target = $region52
        $region51: #{tpu_custom_call.1} parent=39 // pred_region
          %295 = dma.done %s288, 2048
        $region52: #{tpu_custom_call.1} parent=39 // pred_fallthru
          _
        %p296 = pneg %p54
        %p297 = pneg %p51
        %s298 = sand.u32 %s21, 1
        %s299 = scalar_lea.sflag [#allocation7], %s298
        %s300 = sand.u32 %s67, 1
        %s301 = smul.addr %s300, 128
        %s302 = scalar_lea.vmem [#allocation6], %s301
        %p303 = pneg %p80
        %p304 = pneg %p77
        %s305 = smul.u32 2, %s26
        %p306 = scmp.lt.s32.totalorder %s305, 3
        %s307 = scalar_select %p306, %s305, 3
        %s308 = scalar_lea.vmem %s2, %s307
        %p309 = pneg %p106
        %p310 = pneg %p103
        %s311 = sand.u32 %s21, 1
        %s312 = scalar_lea.sflag [#allocation7], %s311
        %s313 = sand.u32 %s119, 1
        %s314 = smul.addr %s313, 128
        %s315 = scalar_lea.vmem [#allocation8], %s314
        %p316 = pneg %p132
        %p317 = pneg %p129
        %p318 = pneg %p153
        %p319 = pneg %p150
        %p320 = pneg %p179
        %p321 = pneg %p176
        %s322 = smul.u32 16, %s25
        %s323 = smul.u32 2, %s26
        %s324 = smul.u32 2, %s26
        %p325 = scmp.lt.s32.totalorder %s324, 3
        %s326 = scalar_select %p325, %s324, 3
        %s327 = scalar_lea.vmem %s2, %s326
        %s328 = smul.u32 2, %s26
        %s329 = smul.u32 32, %s26
        %s330 = smul.u32 16, %s25
        %v332 = vld [vmem:[#allocation3] sm:$0xf]
        %v333 = vld [vmem:[#allocation3 + $0x4] sm:$0xf]
        %v334 = vld [vmem:[#allocation3 + $0x8] sm:$0xf]
        %v335 = vld [vmem:[#allocation3 + $0xc] sm:$0xf]
        %v336 = vld [vmem:[#allocation3 + $0x10] sm:$0xf]
        %v337 = vld [vmem:[#allocation3 + $0x14] sm:$0xf]
        %v338 = vld [vmem:[#allocation3 + $0x18] sm:$0xf]
        %v339 = vld [vmem:[#allocation3 + $0x1c] sm:$0xf]
        %v340 = vld [vmem:[#allocation3 + $0x20] sm:$0xf]
        %v341 = vld [vmem:[#allocation3 + $0x24] sm:$0xf]
        %v342 = vld [vmem:[#allocation3 + $0x28] sm:$0xf]
        %v343 = vld [vmem:[#allocation3 + $0x2c] sm:$0xf]
        %v344 = vld [vmem:[#allocation3 + $0x30] sm:$0xf]
        %v345 = vld [vmem:[#allocation3 + $0x34] sm:$0xf]
        %v346 = vld [vmem:[#allocation3 + $0x38] sm:$0xf]
        %v347 = vld [vmem:[#allocation3 + $0x3c] sm:$0xf]
        %v348 = vld [vmem:[%s282] sm:$0xff]
        %v349 = vld [vmem:[%s282 + $0x8] sm:$0xff]
        %v350 = vld [vmem:[%s282 + $0x10] sm:$0xff]
        %v351 = vld [vmem:[%s282 + $0x18] sm:$0xff]
        %v352 = vld [vmem:[%s282 + $0x20] sm:$0xff]
        %v353 = vld [vmem:[%s282 + $0x28] sm:$0xff]
        %v354 = vld [vmem:[%s282 + $0x30] sm:$0xff]
        %v355 = vld [vmem:[%s282 + $0x38] sm:$0xff]
        %v356 = vld [vmem:[%s282 + $0x40] sm:$0xff]
        %v357 = vld [vmem:[%s282 + $0x48] sm:$0xff]
        %v358 = vld [vmem:[%s282 + $0x50] sm:$0xff]
        %v359 = vld [vmem:[%s282 + $0x58] sm:$0xff]
        %v360 = vld [vmem:[%s282 + $0x60] sm:$0xff]
        %v361 = vld [vmem:[%s282 + $0x68] sm:$0xff]
        %v362 = vld [vmem:[%s282 + $0x70] sm:$0xff]
        %v363 = vld [vmem:[%s282 + $0x78] sm:$0xff]
        %v364 = vld [vmem:[%s327] sm:$0x3]
        %v366 = vlaneseq
        %v367 = vshrl.u32 %v366, 7
        %v368 = vsub.s32 0, %v367
        %v369 = vrot.slane %v364, %v368
        %v370 = vlaneseq
        %v371 = vshrl.u32 %v370, 7
        %v372 = vsub.s32 1, %v371
        %v373 = vrot.slane %v364, %v372
        %v392 = vunpack.c.l.b16 %v332
        %v393 = vunpack.c.l.b16 %v333
        %v394 = vunpack.c.l.b16 %v334
        %v395 = vunpack.c.l.b16 %v335
        %v396 = vunpack.c.l.b16 %v336
        %v397 = vunpack.c.l.b16 %v337
        %v398 = vunpack.c.l.b16 %v338
        %v399 = vunpack.c.l.b16 %v339
        %v400 = vunpack.c.l.b16 %v340
        %v401 = vunpack.c.l.b16 %v341
        %v402 = vunpack.c.l.b16 %v342
        %v403 = vunpack.c.l.b16 %v343
        %v404 = vunpack.c.l.b16 %v344
        %v405 = vunpack.c.l.b16 %v345
        %v406 = vunpack.c.l.b16 %v346
        %v407 = vunpack.c.l.b16 %v347
        %v408 = vpack.c.b16 %v393, %v392
        %v409 = vpack.c.b16 %v395, %v394
        %v410 = vpack.c.b16 %v397, %v396
        %v411 = vpack.c.b16 %v399, %v398
        %v412 = vpack.c.b16 %v401, %v400
        %v413 = vpack.c.b16 %v403, %v402
        %v414 = vpack.c.b16 %v405, %v404
        %v415 = vpack.c.b16 %v407, %v406
        %v440 = vunpack.c.l.b16 %v348
        %v441 = vunpack.c.h.b16 %v348
        %v442 = vunpack.c.l.b16 %v349
        %v443 = vunpack.c.h.b16 %v349
        %v444 = vunpack.c.l.b16 %v350
        %v445 = vunpack.c.h.b16 %v350
        %v446 = vunpack.c.l.b16 %v351
        %v447 = vunpack.c.h.b16 %v351
        %v448 = vunpack.c.l.b16 %v352
        %v449 = vunpack.c.h.b16 %v352
        %v450 = vunpack.c.l.b16 %v353
        %v451 = vunpack.c.h.b16 %v353
        %v452 = vunpack.c.l.b16 %v354
        %v453 = vunpack.c.h.b16 %v354
        %v454 = vunpack.c.l.b16 %v355
        %v455 = vunpack.c.h.b16 %v355
        %v456 = vunpack.c.l.b16 %v356
        %v457 = vunpack.c.h.b16 %v356
        %v458 = vunpack.c.l.b16 %v357
        %v459 = vunpack.c.h.b16 %v357
        %v460 = vunpack.c.l.b16 %v358
        %v461 = vunpack.c.h.b16 %v358
        %v462 = vunpack.c.l.b16 %v359
        %v463 = vunpack.c.h.b16 %v359
        %v464 = vunpack.c.l.b16 %v360
        %v465 = vunpack.c.h.b16 %v360
        %v466 = vunpack.c.l.b16 %v361
        %v467 = vunpack.c.h.b16 %v361
        %v468 = vunpack.c.l.b16 %v362
        %v469 = vunpack.c.h.b16 %v362
        %v470 = vunpack.c.l.b16 %v363
        %v471 = vunpack.c.h.b16 %v363
        %v472 = vpack.c.b16 %v442, %v440
        %v473 = vpack.c.b16 %v443, %v441
        %v474 = vpack.c.b16 %v446, %v444
        %v475 = vpack.c.b16 %v447, %v445
        %v476 = vpack.c.b16 %v450, %v448
        %v477 = vpack.c.b16 %v451, %v449
        %v478 = vpack.c.b16 %v454, %v452
        %v479 = vpack.c.b16 %v455, %v453
        %v480 = vpack.c.b16 %v458, %v456
        %v481 = vpack.c.b16 %v459, %v457
        %v482 = vpack.c.b16 %v462, %v460
        %v483 = vpack.c.b16 %v463, %v461
        %v484 = vpack.c.b16 %v466, %v464
        %v485 = vpack.c.b16 %v467, %v465
        %v486 = vpack.c.b16 %v470, %v468
        %v487 = vpack.c.b16 %v471, %v469
        %504 = vmatprep.subr.bf16.mxu0 %v473
        %505 = vmatpush1.bf16.msra.mxu0 %v472
        %506 = vmatprep.subr.bf16.mxu0 %v475
        %507 = vmatpush1.bf16.msra.mxu0 %v474
        %508 = vmatprep.subr.bf16.mxu0 %v477
        %509 = vmatpush1.bf16.msra.mxu0 %v476
        %510 = vmatprep.subr.bf16.mxu0 %v479
        %511 = vmatpush1.bf16.msra.mxu0 %v478
        %512 = vmatprep.subr.bf16.mxu0 %v481
        %513 = vmatpush1.bf16.msra.mxu0 %v480
        %514 = vmatprep.subr.bf16.mxu0 %v483
        %515 = vmatpush1.bf16.msra.mxu0 %v482
        %516 = vmatprep.subr.bf16.mxu0 %v485
        %517 = vmatpush1.bf16.msra.mxu0 %v484
        %518 = vmatprep.subr.bf16.mxu0 %v487
        %519 = vmatpush1.bf16.msra.mxu0 %v486
        %520 = vmatprep.subr.bf16.mxu0 0
        %521 = vmatpush1.bf16.msra.mxu0 0
        %522 = vmatprep.subr.bf16.mxu0 0
        %523 = vmatpush1.bf16.msra.mxu0 0
        %524 = vmatprep.subr.bf16.mxu0 0
        %525 = vmatpush1.bf16.msra.mxu0 0
        %526 = vmatprep.subr.bf16.mxu0 0
        %527 = vmatpush1.bf16.msra.mxu0 0
        %528 = vmatprep.subr.bf16.mxu0 0
        %529 = vmatpush1.bf16.msra.mxu0 0
        %530 = vmatprep.subr.bf16.mxu0 0
        %531 = vmatpush1.bf16.msra.mxu0 0
        %532 = vmatprep.subr.bf16.mxu0 0
        %533 = vmatpush1.bf16.msra.mxu0 0
        %534 = vmatprep.subr.bf16.mxu0 0
        %535 = vmatpush1.bf16.msra.mxu0 0
        %536 = vmatprep.mubr.bf16.mxu0 0
        %537 = vmatmul.mubr.bf16.gmra.mrb[0].mxu0 %v408
        %v538 = vpop.f32.mrb[0].mxu0
        %v539 = vadd.f32 %v369, %v538
        %v540 = vpop.f32.mrb[0].mxu0
        %v541 = vadd.f32 %v373, %v540
        %v542 = vpop.f32.mrb[0].mxu0
        %v543 = vadd.f32 %v369, %v542
        %v544 = vpop.f32.mrb[0].mxu0
        %v545 = vadd.f32 %v373, %v544
        %546 = vmatprep.mubr.bf16.mxu0 0
        %547 = vmatmul.mubr.bf16.gmra.mrb[0].mxu0 %v409
        %v548 = vpop.f32.mrb[0].mxu0
        %v549 = vadd.f32 %v369, %v548
        %v550 = vpop.f32.mrb[0].mxu0
        %v551 = vadd.f32 %v373, %v550
        %v552 = vpop.f32.mrb[0].mxu0
        %v553 = vadd.f32 %v369, %v552
        %v554 = vpop.f32.mrb[0].mxu0
        %v555 = vadd.f32 %v373, %v554
        %556 = vmatprep.mubr.bf16.mxu0 0
        %557 = vmatmul.mubr.bf16.gmra.mrb[0].mxu0 %v410
        %v558 = vpop.f32.mrb[0].mxu0
        %v559 = vadd.f32 %v369, %v558
        %v560 = vpop.f32.mrb[0].mxu0
        %v561 = vadd.f32 %v373, %v560
        %v562 = vpop.f32.mrb[0].mxu0
        %v563 = vadd.f32 %v369, %v562
        %v564 = vpop.f32.mrb[0].mxu0
        %v565 = vadd.f32 %v373, %v564
        %566 = vmatprep.mubr.bf16.mxu0 0
        %567 = vmatmul.mubr.bf16.gmra.mrb[0].mxu0 %v411
        %v568 = vpop.f32.mrb[0].mxu0
        %v569 = vadd.f32 %v369, %v568
        %v570 = vpop.f32.mrb[0].mxu0
        %v571 = vadd.f32 %v373, %v570
        %v572 = vpop.f32.mrb[0].mxu0
        %v573 = vadd.f32 %v369, %v572
        %v574 = vpop.f32.mrb[0].mxu0
        %v575 = vadd.f32 %v373, %v574
        %576 = vmatprep.mubr.bf16.mxu0 0
        %577 = vmatmul.mubr.bf16.gmra.mrb[0].mxu0 %v412
        %v578 = vpop.f32.mrb[0].mxu0
        %v579 = vadd.f32 %v369, %v578
        %v580 = vpop.f32.mrb[0].mxu0
        %v581 = vadd.f32 %v373, %v580
        %v582 = vpop.f32.mrb[0].mxu0
        %v583 = vadd.f32 %v369, %v582
        %v584 = vpop.f32.mrb[0].mxu0
        %v585 = vadd.f32 %v373, %v584
        %586 = vmatprep.mubr.bf16.mxu0 0
        %587 = vmatmul.mubr.bf16.gmra.mrb[0].mxu0 %v413
        %v588 = vpop.f32.mrb[0].mxu0
        %v589 = vadd.f32 %v369, %v588
        %v590 = vpop.f32.mrb[0].mxu0
        %v591 = vadd.f32 %v373, %v590
        %v592 = vpop.f32.mrb[0].mxu0
        %v593 = vadd.f32 %v369, %v592
        %v594 = vpop.f32.mrb[0].mxu0
        %v595 = vadd.f32 %v373, %v594
        %596 = vmatprep.mubr.bf16.mxu0 0
        %597 = vmatmul.mubr.bf16.gmra.mrb[0].mxu0 %v414
        %v598 = vpop.f32.mrb[0].mxu0
        %v599 = vadd.f32 %v369, %v598
        %v600 = vpop.f32.mrb[0].mxu0
        %v601 = vadd.f32 %v373, %v600
        %v602 = vpop.f32.mrb[0].mxu0
        %v603 = vadd.f32 %v369, %v602
        %v604 = vpop.f32.mrb[0].mxu0
        %v605 = vadd.f32 %v373, %v604
        %606 = vmatprep.mubr.bf16.mxu0 0
        %607 = vmatmul.mubr.bf16.gmra.mrb[0].mxu0 %v415
        %v608 = vpop.f32.mrb[0].mxu0
        %v609 = vadd.f32 %v369, %v608
        %v610 = vpop.f32.mrb[0].mxu0
        %v611 = vadd.f32 %v373, %v610
        %v612 = vpop.f32.mrb[0].mxu0
        %v613 = vadd.f32 %v369, %v612
        %v614 = vpop.f32.mrb[0].mxu0
        %v615 = vadd.f32 %v373, %v614
        %616 = vdwg.mxu0
        %v617 = vmax.f32 %v539, 0.0
        %v618 = vmax.f32 %v541, 0.0
        %v619 = vmax.f32 %v543, 0.0
        %v620 = vmax.f32 %v545, 0.0
        %v621 = vmax.f32 %v549, 0.0
        %v622 = vmax.f32 %v551, 0.0
        %v623 = vmax.f32 %v553, 0.0
        %v624 = vmax.f32 %v555, 0.0
        %v625 = vmax.f32 %v559, 0.0
        %v626 = vmax.f32 %v561, 0.0
        %v627 = vmax.f32 %v563, 0.0
        %v628 = vmax.f32 %v565, 0.0
        %v629 = vmax.f32 %v569, 0.0
        %v630 = vmax.f32 %v571, 0.0
        %v631 = vmax.f32 %v573, 0.0
        %v632 = vmax.f32 %v575, 0.0
        %v633 = vmax.f32 %v579, 0.0
        %v634 = vmax.f32 %v581, 0.0
        %v635 = vmax.f32 %v583, 0.0
        %v636 = vmax.f32 %v585, 0.0
        %v637 = vmax.f32 %v589, 0.0
        %v638 = vmax.f32 %v591, 0.0
        %v639 = vmax.f32 %v593, 0.0
        %v640 = vmax.f32 %v595, 0.0
        %v641 = vmax.f32 %v599, 0.0
        %v642 = vmax.f32 %v601, 0.0
        %v643 = vmax.f32 %v603, 0.0
        %v644 = vmax.f32 %v605, 0.0
        %v645 = vmax.f32 %v609, 0.0
        %v646 = vmax.f32 %v611, 0.0
        %v647 = vmax.f32 %v613, 0.0
        %v648 = vmax.f32 %v615, 0.0
        %v649 = vpack.c.bf16 %v619, %v617
        %v650 = vpack.c.bf16 %v620, %v618
        %v651 = vpack.c.bf16 %v623, %v621
        %v652 = vpack.c.bf16 %v624, %v622
        %v653 = vpack.c.bf16 %v627, %v625
        %v654 = vpack.c.bf16 %v628, %v626
        %v655 = vpack.c.bf16 %v631, %v629
        %v656 = vpack.c.bf16 %v632, %v630
        %v657 = vpack.c.bf16 %v635, %v633
        %v658 = vpack.c.bf16 %v636, %v634
        %v659 = vpack.c.bf16 %v639, %v637
        %v660 = vpack.c.bf16 %v640, %v638
        %v661 = vpack.c.bf16 %v643, %v641
        %v662 = vpack.c.bf16 %v644, %v642
        %v663 = vpack.c.bf16 %v647, %v645
        %v664 = vpack.c.bf16 %v648, %v646
        %v665 = vld [vmem:[%s291] sm:$0xf]
        %v666 = vld [vmem:[%s291 + $0x4] sm:$0xf]
        %v667 = vld [vmem:[%s291 + $0x8] sm:$0xf]
        %v668 = vld [vmem:[%s291 + $0xc] sm:$0xf]
        %v669 = vld [vmem:[%s291 + $0x10] sm:$0xf]
        %v670 = vld [vmem:[%s291 + $0x14] sm:$0xf]
        %v671 = vld [vmem:[%s291 + $0x18] sm:$0xf]
        %v672 = vld [vmem:[%s291 + $0x1c] sm:$0xf]
        %v673 = vld [vmem:[%s291 + $0x20] sm:$0xf]
        %v674 = vld [vmem:[%s291 + $0x24] sm:$0xf]
        %v675 = vld [vmem:[%s291 + $0x28] sm:$0xf]
        %v676 = vld [vmem:[%s291 + $0x2c] sm:$0xf]
        %v677 = vld [vmem:[%s291 + $0x30] sm:$0xf]
        %v678 = vld [vmem:[%s291 + $0x34] sm:$0xf]
        %v679 = vld [vmem:[%s291 + $0x38] sm:$0xf]
        %v680 = vld [vmem:[%s291 + $0x3c] sm:$0xf]
        %v681 = vld [vmem:[%s291 + $0x40] sm:$0xf]
        %v682 = vld [vmem:[%s291 + $0x44] sm:$0xf]
        %v683 = vld [vmem:[%s291 + $0x48] sm:$0xf]
        %v684 = vld [vmem:[%s291 + $0x4c] sm:$0xf]
        %v685 = vld [vmem:[%s291 + $0x50] sm:$0xf]
        %v686 = vld [vmem:[%s291 + $0x54] sm:$0xf]
        %v687 = vld [vmem:[%s291 + $0x58] sm:$0xf]
        %v688 = vld [vmem:[%s291 + $0x5c] sm:$0xf]
        %v689 = vld [vmem:[%s291 + $0x60] sm:$0xf]
        %v690 = vld [vmem:[%s291 + $0x64] sm:$0xf]
        %v691 = vld [vmem:[%s291 + $0x68] sm:$0xf]
        %v692 = vld [vmem:[%s291 + $0x6c] sm:$0xf]
        %v693 = vld [vmem:[%s291 + $0x70] sm:$0xf]
        %v694 = vld [vmem:[%s291 + $0x74] sm:$0xf]
        %v695 = vld [vmem:[%s291 + $0x78] sm:$0xf]
        %v696 = vld [vmem:[%s291 + $0x7c] sm:$0xf]
        %v729 = vunpack.c.l.b16 %v665
        %v730 = vunpack.c.l.b16 %v666
        %v731 = vunpack.c.l.b16 %v667
        %v732 = vunpack.c.l.b16 %v668
        %v733 = vunpack.c.l.b16 %v669
        %v734 = vunpack.c.l.b16 %v670
        %v735 = vunpack.c.l.b16 %v671
        %v736 = vunpack.c.l.b16 %v672
        %v737 = vunpack.c.l.b16 %v673
        %v738 = vunpack.c.l.b16 %v674
        %v739 = vunpack.c.l.b16 %v675
        %v740 = vunpack.c.l.b16 %v676
        %v741 = vunpack.c.l.b16 %v677
        %v742 = vunpack.c.l.b16 %v678
        %v743 = vunpack.c.l.b16 %v679
        %v744 = vunpack.c.l.b16 %v680
        %v745 = vunpack.c.l.b16 %v681
        %v746 = vunpack.c.l.b16 %v682
        %v747 = vunpack.c.l.b16 %v683
        %v748 = vunpack.c.l.b16 %v684
        %v749 = vunpack.c.l.b16 %v685
        %v750 = vunpack.c.l.b16 %v686
        %v751 = vunpack.c.l.b16 %v687
        %v752 = vunpack.c.l.b16 %v688
        %v753 = vunpack.c.l.b16 %v689
        %v754 = vunpack.c.l.b16 %v690
        %v755 = vunpack.c.l.b16 %v691
        %v756 = vunpack.c.l.b16 %v692
        %v757 = vunpack.c.l.b16 %v693
        %v758 = vunpack.c.l.b16 %v694
        %v759 = vunpack.c.l.b16 %v695
        %v760 = vunpack.c.l.b16 %v696
        %v761 = vpack.c.b16 %v730, %v729
        %v762 = vpack.c.b16 %v732, %v731
        %v763 = vpack.c.b16 %v734, %v733
        %v764 = vpack.c.b16 %v736, %v735
        %v765 = vpack.c.b16 %v738, %v737
        %v766 = vpack.c.b16 %v740, %v739
        %v767 = vpack.c.b16 %v742, %v741
        %v768 = vpack.c.b16 %v744, %v743
        %v769 = vpack.c.b16 %v746, %v745
        %v770 = vpack.c.b16 %v748, %v747
        %v771 = vpack.c.b16 %v750, %v749
        %v772 = vpack.c.b16 %v752, %v751
        %v773 = vpack.c.b16 %v754, %v753
        %v774 = vpack.c.b16 %v756, %v755
        %v775 = vpack.c.b16 %v758, %v757
        %v776 = vpack.c.b16 %v760, %v759
        %793 = vmatprep.subr.bf16.mxu0 0
        %794 = vmatpush1.bf16.msra.mxu0 %v761
        %795 = vmatprep.subr.bf16.mxu0 0
        %796 = vmatpush1.bf16.msra.mxu0 %v762
        %797 = vmatprep.subr.bf16.mxu0 0
        %798 = vmatpush1.bf16.msra.mxu0 %v763
        %799 = vmatprep.subr.bf16.mxu0 0
        %800 = vmatpush1.bf16.msra.mxu0 %v764
        %801 = vmatprep.subr.bf16.mxu0 0
        %802 = vmatpush1.bf16.msra.mxu0 %v765
        %803 = vmatprep.subr.bf16.mxu0 0
        %804 = vmatpush1.bf16.msra.mxu0 %v766
        %805 = vmatprep.subr.bf16.mxu0 0
        %806 = vmatpush1.bf16.msra.mxu0 %v767
        %807 = vmatprep.subr.bf16.mxu0 0
        %808 = vmatpush1.bf16.msra.mxu0 %v768
        %809 = vmatprep.subr.bf16.mxu0 0
        %810 = vmatpush1.bf16.msra.mxu0 %v769
        %811 = vmatprep.subr.bf16.mxu0 0
        %812 = vmatpush1.bf16.msra.mxu0 %v770
        %813 = vmatprep.subr.bf16.mxu0 0
        %814 = vmatpush1.bf16.msra.mxu0 %v771
        %815 = vmatprep.subr.bf16.mxu0 0
        %816 = vmatpush1.bf16.msra.mxu0 %v772
        %817 = vmatprep.subr.bf16.mxu0 0
        %818 = vmatpush1.bf16.msra.mxu0 %v773
        %819 = vmatprep.subr.bf16.mxu0 0
        %820 = vmatpush1.bf16.msra.mxu0 %v774
        %821 = vmatprep.subr.bf16.mxu0 0
        %822 = vmatpush1.bf16.msra.mxu0 %v775
        %823 = vmatprep.subr.bf16.mxu0 0
        %824 = vmatpush1.bf16.msra.mxu0 %v776
        %825 = vmatprep.mubr.bf16.mxu0 %v650
        %826 = vmatmul.mubr.bf16.gmra.mrb[0].mxu0 %v649
        %v827 = vpop.f32.mrb[0].mxu0
        %v828 = vadd.f32 0.0, %v827
        %v829 = vpop.f32.mrb[0].mxu0
        %v830 = vpop.f32.mrb[0].mxu0
        %v831 = vadd.f32 0.0, %v830
        %v832 = vpop.f32.mrb[0].mxu0
        %833 = vmatprep.mubr.bf16.mxu0 %v652
        %834 = vmatmul.mubr.bf16.gmra.mrb[0].mxu0 %v651
        %v835 = vpop.f32.mrb[0].mxu0
        %v836 = vadd.f32 0.0, %v835
        %v837 = vpop.f32.mrb[0].mxu0
        %v838 = vpop.f32.mrb[0].mxu0
        %v839 = vadd.f32 0.0, %v838
        %v840 = vpop.f32.mrb[0].mxu0
        %841 = vmatprep.mubr.bf16.mxu0 %v654
        %842 = vmatmul.mubr.bf16.gmra.mrb[0].mxu0 %v653
        %v843 = vpop.f32.mrb[0].mxu0
        %v844 = vadd.f32 0.0, %v843
        %v845 = vpop.f32.mrb[0].mxu0
        %v846 = vpop.f32.mrb[0].mxu0
        %v847 = vadd.f32 0.0, %v846
        %v848 = vpop.f32.mrb[0].mxu0
        %849 = vmatprep.mubr.bf16.mxu0 %v656
        %850 = vmatmul.mubr.bf16.gmra.mrb[0].mxu0 %v655
        %v851 = vpop.f32.mrb[0].mxu0
        %v852 = vadd.f32 0.0, %v851
        %v853 = vpop.f32.mrb[0].mxu0
        %v854 = vpop.f32.mrb[0].mxu0
        %v855 = vadd.f32 0.0, %v854
        %v856 = vpop.f32.mrb[0].mxu0
        %857 = vmatprep.mubr.bf16.mxu0 %v658
        %858 = vmatmul.mubr.bf16.gmra.mrb[0].mxu0 %v657
        %v859 = vpop.f32.mrb[0].mxu0
        %v860 = vadd.f32 0.0, %v859
        %v861 = vpop.f32.mrb[0].mxu0
        %v862 = vpop.f32.mrb[0].mxu0
        %v863 = vadd.f32 0.0, %v862
        %v864 = vpop.f32.mrb[0].mxu0
        %865 = vmatprep.mubr.bf16.mxu0 %v660
        %866 = vmatmul.mubr.bf16.gmra.mrb[0].mxu0 %v659
        %v867 = vpop.f32.mrb[0].mxu0
        %v868 = vadd.f32 0.0, %v867
        %v869 = vpop.f32.mrb[0].mxu0
        %v870 = vpop.f32.mrb[0].mxu0
        %v871 = vadd.f32 0.0, %v870
        %v872 = vpop.f32.mrb[0].mxu0
        %873 = vmatprep.mubr.bf16.mxu0 %v662
        %874 = vmatmul.mubr.bf16.gmra.mrb[0].mxu0 %v661
        %v875 = vpop.f32.mrb[0].mxu0
        %v876 = vadd.f32 0.0, %v875
        %v877 = vpop.f32.mrb[0].mxu0
        %v878 = vpop.f32.mrb[0].mxu0
        %v879 = vadd.f32 0.0, %v878
        %v880 = vpop.f32.mrb[0].mxu0
        %881 = vmatprep.mubr.bf16.mxu0 %v664
        %882 = vmatmul.mubr.bf16.gmra.mrb[0].mxu0 %v663
        %v883 = vpop.f32.mrb[0].mxu0
        %v884 = vadd.f32 0.0, %v883
        %v885 = vpop.f32.mrb[0].mxu0
        %v886 = vpop.f32.mrb[0].mxu0
        %v887 = vadd.f32 0.0, %v886
        %v888 = vpop.f32.mrb[0].mxu0
        %889 = vdwg.mxu0
        %p890 = scmp.eq.s32.totalorder %s26, 0
        // Predicated region
        $region53: #{tpu_custom_call.1} parent=39 // pred_check
          %p891 = pneg %p890
        $region54: #{tpu_custom_call.1} parent=39 // pred_check_branch
          %893 = sbr.rel (%p891) target = $region56
        $region55: #{tpu_custom_call.1} parent=39 // pred_region
          %894 = vst [vmem:[#allocation2] sm:$0xff] %v828
          %895 = vst [vmem:[#allocation2 + $0x8] sm:$0xff] %v831
          %896 = vst [vmem:[#allocation2 + $0x10] sm:$0xff] %v836
          %897 = vst [vmem:[#allocation2 + $0x18] sm:$0xff] %v839
          %898 = vst [vmem:[#allocation2 + $0x20] sm:$0xff] %v844
          %899 = vst [vmem:[#allocation2 + $0x28] sm:$0xff] %v847
          %900 = vst [vmem:[#allocation2 + $0x30] sm:$0xff] %v852
          %901 = vst [vmem:[#allocation2 + $0x38] sm:$0xff] %v855
          %902 = vst [vmem:[#allocation2 + $0x40] sm:$0xff] %v860
          %903 = vst [vmem:[#allocation2 + $0x48] sm:$0xff] %v863
          %904 = vst [vmem:[#allocation2 + $0x50] sm:$0xff] %v868
          %905 = vst [vmem:[#allocation2 + $0x58] sm:$0xff] %v871
          %906 = vst [vmem:[#allocation2 + $0x60] sm:$0xff] %v876
          %907 = vst [vmem:[#allocation2 + $0x68] sm:$0xff] %v879
          %908 = vst [vmem:[#allocation2 + $0x70] sm:$0xff] %v884
          %909 = vst [vmem:[#allocation2 + $0x78] sm:$0xff] %v887
        $region56: #{tpu_custom_call.1} parent=39 // pred_fallthru
          _
        %p910 = scmp.ne.s32.totalorder %s26, 0
        // Predicated region
        $region57: #{tpu_custom_call.1} parent=39 // pred_check
          %p911 = pneg %p910
        $region58: #{tpu_custom_call.1} parent=39 // pred_check_branch
          %913 = sbr.rel (%p911) target = $region60
        $region59: #{tpu_custom_call.1} parent=39 // pred_region
          %v914 = vld [vmem:[#allocation2] sm:$0xff]
          %v915 = vld [vmem:[#allocation2 + $0x8] sm:$0xff]
          %v916 = vld [vmem:[#allocation2 + $0x10] sm:$0xff]
          %v917 = vld [vmem:[#allocation2 + $0x18] sm:$0xff]
          %v918 = vld [vmem:[#allocation2 + $0x20] sm:$0xff]
          %v919 = vld [vmem:[#allocation2 + $0x28] sm:$0xff]
          %v920 = vld [vmem:[#allocation2 + $0x30] sm:$0xff]
          %v921 = vld [vmem:[#allocation2 + $0x38] sm:$0xff]
          %v922 = vld [vmem:[#allocation2 + $0x40] sm:$0xff]
          %v923 = vld [vmem:[#allocation2 + $0x48] sm:$0xff]
          %v924 = vld [vmem:[#allocation2 + $0x50] sm:$0xff]
          %v925 = vld [vmem:[#allocation2 + $0x58] sm:$0xff]
          %v926 = vld [vmem:[#allocation2 + $0x60] sm:$0xff]
          %v927 = vld [vmem:[#allocation2 + $0x68] sm:$0xff]
          %v928 = vld [vmem:[#allocation2 + $0x70] sm:$0xff]
          %v929 = vld [vmem:[#allocation2 + $0x78] sm:$0xff]
          %v930 = vadd.f32 %v914, %v828
          %v931 = vadd.f32 %v915, %v831
          %v932 = vadd.f32 %v916, %v836
          %v933 = vadd.f32 %v917, %v839
          %v934 = vadd.f32 %v918, %v844
          %v935 = vadd.f32 %v919, %v847
          %v936 = vadd.f32 %v920, %v852
          %v937 = vadd.f32 %v921, %v855
          %v938 = vadd.f32 %v922, %v860
          %v939 = vadd.f32 %v923, %v863
          %v940 = vadd.f32 %v924, %v868
          %v941 = vadd.f32 %v925, %v871
          %v942 = vadd.f32 %v926, %v876
          %v943 = vadd.f32 %v927, %v879
          %v944 = vadd.f32 %v928, %v884
          %v945 = vadd.f32 %v929, %v887
          %946 = vst [vmem:[#allocation2] sm:$0xff] %v930
          %947 = vst [vmem:[#allocation2 + $0x8] sm:$0xff] %v931
          %948 = vst [vmem:[#allocation2 + $0x10] sm:$0xff] %v932
          %949 = vst [vmem:[#allocation2 + $0x18] sm:$0xff] %v933
          %950 = vst [vmem:[#allocation2 + $0x20] sm:$0xff] %v934
          %951 = vst [vmem:[#allocation2 + $0x28] sm:$0xff] %v935
          %952 = vst [vmem:[#allocation2 + $0x30] sm:$0xff] %v936
          %953 = vst [vmem:[#allocation2 + $0x38] sm:$0xff] %v937
          %954 = vst [vmem:[#allocation2 + $0x40] sm:$0xff] %v938
          %955 = vst [vmem:[#allocation2 + $0x48] sm:$0xff] %v939
          %956 = vst [vmem:[#allocation2 + $0x50] sm:$0xff] %v940
          %957 = vst [vmem:[#allocation2 + $0x58] sm:$0xff] %v941
          %958 = vst [vmem:[#allocation2 + $0x60] sm:$0xff] %v942
          %959 = vst [vmem:[#allocation2 + $0x68] sm:$0xff] %v943
          %960 = vst [vmem:[#allocation2 + $0x70] sm:$0xff] %v944
          %961 = vst [vmem:[#allocation2 + $0x78] sm:$0xff] %v945
        $region60: #{tpu_custom_call.1} parent=39 // pred_fallthru
          _
        %p962 = scmp.eq.s32.totalorder %s26, 1
        // Predicated region
        $region61: #{tpu_custom_call.1} parent=39 // pred_check
          %p963 = pneg %p962
        $region62: #{tpu_custom_call.1} parent=39 // pred_check_branch
          %965 = sbr.rel (%p963) target = $region64
        $region63: #{tpu_custom_call.1} parent=39 // pred_region
          %v966 = vld [vmem:[#allocation2] sm:$0xff]
          %v967 = vld [vmem:[#allocation2 + $0x8] sm:$0xff]
          %v968 = vld [vmem:[#allocation2 + $0x10] sm:$0xff]
          %v969 = vld [vmem:[#allocation2 + $0x18] sm:$0xff]
          %v970 = vld [vmem:[#allocation2 + $0x20] sm:$0xff]
          %v971 = vld [vmem:[#allocation2 + $0x28] sm:$0xff]
          %v972 = vld [vmem:[#allocation2 + $0x30] sm:$0xff]
          %v973 = vld [vmem:[#allocation2 + $0x38] sm:$0xff]
          %v974 = vld [vmem:[#allocation2 + $0x40] sm:$0xff]
          %v975 = vld [vmem:[#allocation2 + $0x48] sm:$0xff]
          %v976 = vld [vmem:[#allocation2 + $0x50] sm:$0xff]
          %v977 = vld [vmem:[#allocation2 + $0x58] sm:$0xff]
          %v978 = vld [vmem:[#allocation2 + $0x60] sm:$0xff]
          %v979 = vld [vmem:[#allocation2 + $0x68] sm:$0xff]
          %v980 = vld [vmem:[#allocation2 + $0x70] sm:$0xff]
          %v981 = vld [vmem:[#allocation2 + $0x78] sm:$0xff]
          %v982 = vld [vmem:[%s4] sm:$0x1]
          %v984 = vlaneseq
          %v985 = vshrl.u32 %v984, 7
          %v986 = vsub.s32 0, %v985
          %v987 = vrot.slane %v982, %v986
          %v989 = vadd.f32 %v966, %v987
          %v990 = vadd.f32 %v967, %v987
          %v991 = vadd.f32 %v968, %v987
          %v992 = vadd.f32 %v969, %v987
          %v993 = vadd.f32 %v970, %v987
          %v994 = vadd.f32 %v971, %v987
          %v995 = vadd.f32 %v972, %v987
          %v996 = vadd.f32 %v973, %v987
          %v997 = vadd.f32 %v974, %v987
          %v998 = vadd.f32 %v975, %v987
          %v999 = vadd.f32 %v976, %v987
          %v1000 = vadd.f32 %v977, %v987
          %v1001 = vadd.f32 %v978, %v987
          %v1002 = vadd.f32 %v979, %v987
          %v1003 = vadd.f32 %v980, %v987
          %v1004 = vadd.f32 %v981, %v987
          %1005 = vst [vmem:[#allocation9] sm:$0xff] %v989
          %1006 = vst [vmem:[#allocation9 + $0x8] sm:$0xff] %v990
          %1007 = vst [vmem:[#allocation9 + $0x10] sm:$0xff] %v991
          %1008 = vst [vmem:[#allocation9 + $0x18] sm:$0xff] %v992
          %1009 = vst [vmem:[#allocation9 + $0x20] sm:$0xff] %v993
          %1010 = vst [vmem:[#allocation9 + $0x28] sm:$0xff] %v994
          %1011 = vst [vmem:[#allocation9 + $0x30] sm:$0xff] %v995
          %1012 = vst [vmem:[#allocation9 + $0x38] sm:$0xff] %v996
          %1013 = vst [vmem:[#allocation9 + $0x40] sm:$0xff] %v997
          %1014 = vst [vmem:[#allocation9 + $0x48] sm:$0xff] %v998
          %1015 = vst [vmem:[#allocation9 + $0x50] sm:$0xff] %v999
          %1016 = vst [vmem:[#allocation9 + $0x58] sm:$0xff] %v1000
          %1017 = vst [vmem:[#allocation9 + $0x60] sm:$0xff] %v1001
          %1018 = vst [vmem:[#allocation9 + $0x68] sm:$0xff] %v1002
          %1019 = vst [vmem:[#allocation9 + $0x70] sm:$0xff] %v1003
          %1020 = vst [vmem:[#allocation9 + $0x78] sm:$0xff] %v1004
        $region64: #{tpu_custom_call.1} parent=39 // pred_fallthru
          _
        // Predicated region
        $region65: #{tpu_custom_call.1} parent=39 // pred_check
          %p1021 = pneg %p176
        $region66: #{tpu_custom_call.1} parent=39 // pred_check_branch
          %1023 = sbr.rel (%p1021) target = $region68
        $region67: #{tpu_custom_call.1} parent=39 // pred_region
          %s1024 = smul.u32 16, %s25
          %s1026 = ssub.s32 2048, 2048
          %1027 = vsyncadd [#allocation5], %s1026
          %s1028 = smul.addr %s1024, 128
          %s1029 = scalar_lea.hbm %s5, %s1028
          %s1030 = sshll.u32 [#allocation9], 4
          %s1031 = int_to_ptr.vmem [resolvable:$true] %s1030
          %1036 = dma.vmem_to_hbm [thread:$0]  %s1031, 2048, %s1029, [#allocation5], 128, 128, 8
        $region68: #{tpu_custom_call.1} parent=39 // pred_fallthru
          _
        // Predicated region
        $region69: #{tpu_custom_call.1} parent=39 // pred_check
          %p1037 = pneg %p176
        $region70: #{tpu_custom_call.1} parent=39 // pred_check_branch
          %1039 = sbr.rel (%p1037) target = $region72
        $region71: #{tpu_custom_call.1} parent=39 // pred_region
          %1040 = dma.done [#allocation5], 2048
        $region72: #{tpu_custom_call.1} parent=39 // pred_fallthru
          _
      $region40: #{tpu_custom_call.1} parent=5 // pred_fallthru
        _
      %p1041 = scmp.le.s32.totalorder 2, %s16
      // Predicated region
      $region73: #{tpu_custom_call.1} parent=5 // pred_check
        %p1042 = pneg %p1041
      $region74: #{tpu_custom_call.1} parent=5 // pred_check_branch
        %1044 = sbr.rel (%p1042) target = $region76
      $region75: #{tpu_custom_call.1} parent=5 // pred_region
        %s1045 = ssub.s32 %s16, 2
      $region76: #{tpu_custom_call.1} parent=5 // pred_fallthru
        _
    $region6: #{tpu_custom_call.1} parent=1 // loop_footer
      %s20 = sadd.s32 1, %s16
    $region7: #{tpu_custom_call.1} parent=1 // loop_footer_branch
      %15 = sbr.rel target = $region3
    $region8: #{tpu_custom_call.1} parent=1 // loop_exit
      _
    %1046 = vsyncpa [#allocation4], 1
    %s1047 = scalar_lea.sflag [#allocation4], 1
    %1048 = vsyncpa %s1047, 1
    %1049 = vsyncpa [#allocation7], 1
    %s1050 = scalar_lea.sflag [#allocation7], 1
    %1051 = vsyncpa %s1050, 1
    %1052 = vsyncpa [#allocation5], 1
    %s1053 = scalar_lea.sflag [#allocation5], 1
    %1054 = vsyncpa %s1053, 1

</llo_original>
